<compile_context>
chip_gen: v6e
topology: v6e:2x2x1
jax: 0.10.0
libtpu: 0.0.40
codegen_flags: <defaults>
</compile_context>

<pallas_src>
import functools

import jax
import jax.numpy as jnp
from jax.experimental import pallas as pl
from jax.experimental.pallas import tpu as pltpu


def _round_up(n, m):
    return ((n + m - 1) // m) * m


@functools.lru_cache(maxsize=None)
def _vmem_limit_bytes():
    """Per-generation scoped VMEM limit.

    128-MiB parts (v4/v5e/v6e) get a large limit so tiles can grow; v7x
    (64 MiB per TensorCore) and unknown parts stay at a conservative 32 MiB.
    """
    try:
        kind = jax.devices()[0].device_kind.lower()
    except Exception:
        kind = ""
    if ("v4" in kind) or ("v5" in kind) or ("v6" in kind):
        return 96 * 1024 * 1024
    return 32 * 1024 * 1024


def _const_spec(shape, index_map):
    """BlockSpec for a grid-invariant operand.

    Single-buffers the block (Pallas double-buffers every input by default,
    wasting a full VMEM copy of each resident weight) when the installed jax
    supports pipeline_mode=pl.Buffered.
    """
    if hasattr(pl, "Buffered"):
        try:
            return pl.BlockSpec(shape, index_map, pipeline_mode=pl.Buffered(1))
        except Exception:
            pass
    return pl.BlockSpec(shape, index_map)


# ---------------------------------------------------------------------------
# Kernel 1: fused  act(x @ W1 + b1) @ W2 + b2   over row tiles.
#   encoder (ReLU):  ep = relu(x W_enc + b_enc) Wf_enc            (rows = B*T)
#   decoder (tanh):  dp = tanh(e W_dec + b_dec) Wf_dec + bf_joint (rows = B*U)
# ---------------------------------------------------------------------------
def _linear_act_proj_kernel(x_ref, w1_ref, b1_ref, w2_ref, b2_ref, o_ref, *, act):
    x = x_ref[...].astype(jnp.bfloat16)                                 # (tM, Din)
    h = jnp.dot(x, w1_ref[...], preferred_element_type=jnp.float32) + b1_ref[...]
    if act == "relu":
        h = jnp.maximum(h, 0.0)
    else:
        h = jnp.tanh(h)
    z = (jnp.dot(h.astype(jnp.bfloat16), w2_ref[...],
                 preferred_element_type=jnp.float32) + b2_ref[...])     # (tM, JH)
    o_ref[...] = z.astype(o_ref.dtype)


def linear_act_proj(x2d, w1, b1, w2, b2, act, *, tile_m=512,
                    out_dtype=jnp.bfloat16):
    """Returns act(x2d @ w1 + b1) @ w2 + b2 of shape (M, JH).  x2d: (M, Din)."""
    M, Din = x2d.shape
    H = w1.shape[1]
    JH = w2.shape[1]
    tm = min(tile_m, _round_up(M, 16))          # sublane-aligned row tile
    Mp = _round_up(M, tm)
    if Mp != M:
        x2d = jnp.pad(x2d, ((0, Mp - M), (0, 0)))
    out = pl.pallas_call(
        functools.partial(_linear_act_proj_kernel, act=act),
        out_shape=jax.ShapeDtypeStruct((Mp, JH), out_dtype),
        grid=(Mp // tm,),
        in_specs=[
            pl.BlockSpec((tm, Din), lambda i: (i, 0)),
            _const_spec((Din, H), lambda i: (0, 0)),
            _const_spec((1, H), lambda i: (0, 0)),
            _const_spec((H, JH), lambda i: (0, 0)),
            _const_spec((1, JH), lambda i: (0, 0)),
        ],
        out_specs=pl.BlockSpec((tm, JH), lambda i: (i, 0)),
        compiler_params=pltpu.CompilerParams(
            dimension_semantics=("parallel",),
            vmem_limit_bytes=_vmem_limit_bytes()),
    )(x2d, w1, b1, w2, b2)
    return out[:M] if Mp != M else out


# ---------------------------------------------------------------------------
# Kernel 2: RNN-T joint, tiled over (B, T//tT, U//tU).
#   h      = tanh(ep_tile[:,None,:] + dp_tile[None,:,:])   (tT, tU, JH) bf16
#   logits = h @ Wo + bo                                    (tT*tU, V)   f32
#   out    = log_softmax(logits)                            (tT, tU, V)  bf16
# VMEM per step is O(tT*tU*(JH+V)), never the full (T*U, V) logits slab.
# ---------------------------------------------------------------------------
def _joint_kernel(ep_ref, dp_ref, wo_ref, bo_ref, o_ref):
    ep = ep_ref[0]                                   # (tT, JH) bf16
    dp = dp_ref[0]                                   # (tU, JH) bf16 (joint bias folded in)
    h = jnp.tanh(ep[:, None, :] + dp[None, :, :])    # (tT, tU, JH) bf16
    tT, tU, JH = h.shape
    hf = h.reshape(tT * tU, JH)                      # layout-friendly (tU % 16 == 0)
    logits = (jnp.dot(hf, wo_ref[...], preferred_element_type=jnp.float32)
              + bo_ref[...])                                             # (tT*tU, V)
    # log_softmax over vocab (last axis), computed in f32.
    m = jnp.max(logits, axis=-1, keepdims=True)
    lse = jnp.log(jnp.sum(jnp.exp(logits - m), axis=-1, keepdims=True)) + m
    out = logits - lse
    V = out.shape[-1]
    o_ref[0] = out.reshape(tT, tU, V).astype(o_ref.dtype)


def joint(ep, dp, wo, bo, *, tile_t=64, tile_u=16, out_dtype=jnp.bfloat16):
    """ep: (B,T,JH) bf16, dp: (B,U,JH) bf16 -> (B,T,U,V) log-probs."""
    B, T, JH = ep.shape
    _, U, _ = dp.shape
    V = wo.shape[1]
    # Round T/U tiles up to 16 (bf16 sublane packing) so block shapes are
    # aligned and the in-kernel flatten/unflatten is layout-preserving.
    tT = min(tile_t, _round_up(T, 16))
    tU = min(tile_u, _round_up(U, 16))
    Tp = _round_up(T, tT)
    Up = _round_up(U, tU)
    if Tp != T:
        ep = jnp.pad(ep, ((0, 0), (0, Tp - T), (0, 0)))
    if Up != U:
        dp = jnp.pad(dp, ((0, 0), (0, Up - U), (0, 0)))
    out = pl.pallas_call(
        _joint_kernel,
        out_shape=jax.ShapeDtypeStruct((B, Tp, Up, V), out_dtype),
        grid=(B, Tp // tT, Up // tU),
        in_specs=[
            pl.BlockSpec((1, tT, JH), lambda b, t, u: (b, t, 0)),
            pl.BlockSpec((1, tU, JH), lambda b, t, u: (b, u, 0)),
            _const_spec((JH, V), lambda b, t, u: (0, 0)),
            _const_spec((1, V), lambda b, t, u: (0, 0)),
        ],
        out_specs=pl.BlockSpec((1, tT, tU, V), lambda b, t, u: (b, t, u, 0)),
        compiler_params=pltpu.CompilerParams(
            dimension_semantics=("parallel", "parallel", "parallel"),
            vmem_limit_bytes=_vmem_limit_bytes()),
    )(ep, dp, wo, bo)
    if Tp != T or Up != U:
        out = out[:, :T, :U, :]
    return out


# ---------------------------------------------------------------------------
# Model wrapper (parameter setup + glue)
# ---------------------------------------------------------------------------
class RNNTransducerPallas:
    def __init__(self, *, input_dim, vocab_size, embed_dim, enc_hidden,
                 dec_hidden, joint_hidden, phi_idx, pad_idx, sos_idx, key,
                 out_dtype=jnp.bfloat16):
        self.phi_idx = phi_idx
        self.pad_idx = pad_idx
        self.sos_idx = sos_idx
        self.out_dtype = out_dtype

        ks = jax.random.split(key, 8)
        s = 0.1
        bf16 = jnp.bfloat16
        # Weights stored in bf16 (MXU operands), biases in f32 (accumulate path).
        self.W_enc = (s * jax.random.normal(ks[0], (input_dim, enc_hidden))).astype(bf16)
        self.b_enc = jnp.zeros((1, enc_hidden), jnp.float32)
        self.embedding = (s * jax.random.normal(ks[1], (vocab_size, embed_dim))).astype(bf16)
        self.W_dec = (s * jax.random.normal(ks[2], (embed_dim, dec_hidden))).astype(bf16)
        self.b_dec = jnp.zeros((1, dec_hidden), jnp.float32)
        self.Wf_enc = (s * jax.random.normal(ks[3], (enc_hidden, joint_hidden))).astype(bf16)
        self.Wf_dec = (s * jax.random.normal(ks[4], (dec_hidden, joint_hidden))).astype(bf16)
        self.bf = jnp.zeros((1, joint_hidden), jnp.float32)        # joint pre-tanh bias
        self.bf_zero = jnp.zeros((1, joint_hidden), jnp.float32)   # encoder side: no bias
        self.Wo = (s * jax.random.normal(ks[5], (joint_hidden, vocab_size))).astype(bf16)
        self.bo = jnp.zeros((1, vocab_size), jnp.float32)

    def __call__(self, inputs, input_lengths, targets, target_lengths):
        B, T, Din = inputs.shape

        # Encoder + enc-side joint projection (fused), emitted in bf16:
        #   ep = relu(x @ W_enc + b_enc) @ Wf_enc   -> (B, T, JH)
        ep = linear_act_proj(inputs.reshape(B * T, Din), self.W_enc, self.b_enc,
                             self.Wf_enc, self.bf_zero, "relu").reshape(B, T, -1)

        # concat_targets = F.pad(targets, (1, 0), value=phi_idx) -> (B, U_tgt + 1)
        concat_targets = jnp.pad(targets, ((0, 0), (1, 0)),
                                 constant_values=self.phi_idx)
        _ = target_lengths + 1  # decoder lengths (packing not modeled)
        _ = input_lengths       # TODO(synk): length masking not modeled

        # Decoder + dec-side joint projection (fused), joint bias folded in:
        #   dp = tanh(embed @ W_dec + b_dec) @ Wf_dec + bf  -> (B, U, JH) bf16
        emb = jnp.take(self.embedding, concat_targets, axis=0)   # gather in JAX glue
        _, U, E = emb.shape
        dp = linear_act_proj(emb.reshape(B * U, E), self.W_dec, self.b_dec,
                             self.Wf_dec, self.bf, "tanh").reshape(B, U, -1)

        # Joint: (B, T, U, V) log-probs.
        return joint(ep, dp, self.Wo, self.bo, out_dtype=self.out_dtype)


# ---------------------------------------------------------------------------
# Pure-JAX reference (same bf16 operand casts, f32 accumulation).
# ---------------------------------------------------------------------------
def _reference_forward(m, inputs, targets):
    x = inputs.astype(jnp.bfloat16)
    he = jnp.maximum(
        jnp.dot(x, m.W_enc, preferred_element_type=jnp.float32) + m.b_enc, 0.0)
    ep = jnp.dot(he.astype(jnp.bfloat16), m.Wf_enc,
                 preferred_element_type=jnp.float32).astype(jnp.bfloat16)

    ct = jnp.pad(targets, ((0, 0), (1, 0)), constant_values=m.phi_idx)
    emb = jnp.take(m.embedding, ct, axis=0)
    hd = jnp.tanh(
        jnp.dot(emb, m.W_dec, preferred_element_type=jnp.float32) + m.b_dec)
    dp = (jnp.dot(hd.astype(jnp.bfloat16), m.Wf_dec,
                  preferred_element_type=jnp.float32) + m.bf).astype(jnp.bfloat16)

    hj = jnp.tanh(ep[:, :, None, :] + dp[:, None, :, :])     # bf16
    logits = jnp.dot(hj, m.Wo, preferred_element_type=jnp.float32) + m.bo
    return jax.nn.log_softmax(logits, axis=-1)


if __name__ == "__main__":
    # Lane-dense, (8,128)-friendly small shapes.
    B, T, D_IN = 2, 16, 128
    U_TGT = 7                    # decoder sees U_TGT + 1 = 8 tokens
    VOCAB, EMBED = 128, 128
    ENC_H, DEC_H, JOINT_H = 128, 128, 128
    PHI, PAD, SOS = 0, 1, 2

    key = jax.random.PRNGKey(0)
    k_in, k_tgt, k_param = jax.random.split(key, 3)

    inputs = jax.random.normal(k_in, (B, T, D_IN), jnp.float32)
    input_lengths = jnp.full((B,), T, jnp.int32)
    targets = jax.random.randint(k_tgt, (B, U_TGT), 3, VOCAB, jnp.int32)
    target_lengths = jnp.full((B,), U_TGT, jnp.int32)

    model = RNNTransducerPallas(
        input_dim=D_IN, vocab_size=VOCAB, embed_dim=EMBED,
        enc_hidden=ENC_H, dec_hidden=DEC_H, joint_hidden=JOINT_H,
        phi_idx=PHI, pad_idx=PAD, sos_idx=SOS, key=k_param,
        out_dtype=jnp.bfloat16)

    out = model(inputs, input_lengths, targets, target_lengths)
    out = jax.block_until_ready(out)

    assert out.shape == (B, T, U_TGT + 1, VOCAB), out.shape
    out_f32 = out.astype(jnp.float32)

    # log_softmax sanity: probabilities sum to ~1 over vocab (bf16 output).
    assert jnp.allclose(jnp.sum(jnp.exp(out_f32), axis=-1), 1.0, atol=5e-2)

    # Match the pure-JAX reference (same bf16 casts) within bf16 output tolerance.
    ref = _reference_forward(model, inputs, targets)
    assert jnp.allclose(out_f32, ref.astype(jnp.float32), atol=1e-1), (
        float(jnp.max(jnp.abs(out_f32 - ref.astype(jnp.float32)))))

    print("KERNEL_OK")
</pallas_src>

<mosaic_0001>
module attributes {stable_mosaic.version = 11 : i64} {
  func.func @_linear_act_proj_kernel(%arg0: i32, %arg1: memref<32x128xf32, #tpu.memory_space<vmem>>, %arg2: memref<128x128xbf16, #tpu.memory_space<vmem>>, %arg3: memref<1x128xf32, #tpu.memory_space<vmem>>, %arg4: memref<128x128xbf16, #tpu.memory_space<vmem>>, %arg5: memref<1x128xf32, #tpu.memory_space<vmem>>, %arg6: memref<32x128xbf16, #tpu.memory_space<vmem>>) attributes {dimension_semantics = [#tpu.dimension_semantics<parallel>], iteration_bounds = array<i64: 1>, scalar_prefetch = 0 : i64, scratch_operands = 0 : i64, tpu.core_type = #tpu.core_type<tc>, window_params = [{transform_indices = @transform_0, window_bounds = array<i64: 32, 128>}, {pipeline_mode = #tpu.pipeline_mode<synchronous>, transform_indices = @transform_1, window_bounds = array<i64: 128, 128>}, {pipeline_mode = #tpu.pipeline_mode<synchronous>, transform_indices = @transform_2, window_bounds = array<i64: 1, 128>}, {pipeline_mode = #tpu.pipeline_mode<synchronous>, transform_indices = @transform_3, window_bounds = array<i64: 128, 128>}, {pipeline_mode = #tpu.pipeline_mode<synchronous>, transform_indices = @transform_4, window_bounds = array<i64: 1, 128>}, {transform_indices = @transform_5, window_bounds = array<i64: 32, 128>}]} {
    %c0 = arith.constant 0 : index
    %c0_0 = arith.constant 0 : index
    %0 = vector.load %arg1[%c0, %c0_0] : memref<32x128xf32, #tpu.memory_space<vmem>>, vector<32x128xf32>
    %1 = arith.truncf %0 : vector<32x128xf32> to vector<32x128xbf16>
    %c0_1 = arith.constant 0 : index
    %c0_2 = arith.constant 0 : index
    %2 = vector.load %arg2[%c0_1, %c0_2] : memref<128x128xbf16, #tpu.memory_space<vmem>>, vector<128x128xbf16>
    %cst = arith.constant dense<0.000000e+00> : vector<32x128xf32>
    %3 = tpu.matmul %1, %2, %cst {dimension_numbers = #tpu.dot_dimension_numbers<[1], [0], [0], [1], [0, 0, 1, 1], [], []>} : vector<32x128xbf16>, vector<128x128xbf16>, vector<32x128xf32> -> vector<32x128xf32>
    %c0_3 = arith.constant 0 : index
    %c0_4 = arith.constant 0 : index
    %4 = vector.load %arg3[%c0_3, %c0_4] : memref<1x128xf32, #tpu.memory_space<vmem>>, vector<1x128xf32>
    %5 = vector.broadcast %4 : vector<1x128xf32> to vector<32x128xf32>
    %6 = arith.addf %3, %5 : vector<32x128xf32>
    %cst_5 = arith.constant 0.000000e+00 : f32
    %7 = vector.broadcast %cst_5 : f32 to vector<32x128xf32>
    %8 = arith.maximumf %6, %7 : vector<32x128xf32>
    %9 = arith.truncf %8 : vector<32x128xf32> to vector<32x128xbf16>
    %c0_6 = arith.constant 0 : index
    %c0_7 = arith.constant 0 : index
    %10 = vector.load %arg4[%c0_6, %c0_7] : memref<128x128xbf16, #tpu.memory_space<vmem>>, vector<128x128xbf16>
    %cst_8 = arith.constant dense<0.000000e+00> : vector<32x128xf32>
    %11 = tpu.matmul %9, %10, %cst_8 {dimension_numbers = #tpu.dot_dimension_numbers<[1], [0], [0], [1], [0, 0, 1, 1], [], []>} : vector<32x128xbf16>, vector<128x128xbf16>, vector<32x128xf32> -> vector<32x128xf32>
    %c0_9 = arith.constant 0 : index
    %c0_10 = arith.constant 0 : index
    %12 = vector.load %arg5[%c0_9, %c0_10] : memref<1x128xf32, #tpu.memory_space<vmem>>, vector<1x128xf32>
    %13 = vector.broadcast %12 : vector<1x128xf32> to vector<32x128xf32>
    %14 = arith.addf %11, %13 : vector<32x128xf32>
    %15 = arith.truncf %14 : vector<32x128xf32> to vector<32x128xbf16>
    %c0_11 = arith.constant 0 : index
    %c0_12 = arith.constant 0 : index
    %16 = vector.load %arg6[%c0_11, %c0_12] : memref<32x128xbf16, #tpu.memory_space<vmem>>, vector<32x128xbf16>
    tpu.vector_store %arg6[%c0_11, %c0_12], %15 {strides = array<i32>} : memref<32x128xbf16, #tpu.memory_space<vmem>>, vector<32x128xbf16>,
    return
  }
  func.func @transform_0(%arg0: i32) -> (i32, i32) {
    %c0_i32 = arith.constant 0 : i32
    %c0_i32_0 = arith.constant 0 : i32
    return %arg0, %c0_i32 : i32, i32
  }
  func.func @transform_1(%arg0: i32) -> (i32, i32) {
    %c0_i32 = arith.constant 0 : i32
    %c0_i32_0 = arith.constant 0 : i32
    %c0_i32_1 = arith.constant 0 : i32
    return %c0_i32, %c0_i32_0 : i32, i32
  }
  func.func @transform_2(%arg0: i32) -> (i32, i32) {
    %c0_i32 = arith.constant 0 : i32
    %c0_i32_0 = arith.constant 0 : i32
    %c0_i32_1 = arith.constant 0 : i32
    return %c0_i32, %c0_i32_0 : i32, i32
  }
  func.func @transform_3(%arg0: i32) -> (i32, i32) {
    %c0_i32 = arith.constant 0 : i32
    %c0_i32_0 = arith.constant 0 : i32
    %c0_i32_1 = arith.constant 0 : i32
    return %c0_i32, %c0_i32_0 : i32, i32
  }
  func.func @transform_4(%arg0: i32) -> (i32, i32) {
    %c0_i32 = arith.constant 0 : i32
    %c0_i32_0 = arith.constant 0 : i32
    %c0_i32_1 = arith.constant 0 : i32
    return %c0_i32, %c0_i32_0 : i32, i32
  }
  func.func @transform_5(%arg0: i32) -> (i32, i32) {
    %c0_i32 = arith.constant 0 : i32
    %c0_i32_0 = arith.constant 0 : i32
    return %arg0, %c0_i32 : i32, i32
  }
}

</mosaic_0001>

<llo_original>
// kernel: tpu_custom_call.1
$region0: #{tpu_custom_call.1}
  #allocation0 [shape = 'u32[]', space=smem, size = 0x4, offset = 0x4, fixed_abs, tag = 'smem constant byte address 0x4 - core index']
  #allocation1 [shape = 'u32[144,128]{1,0:T(1,128)}', space=vmem, size = 0x12000, scoped, tag = 'internal scratch']
  %s0 = inlined_call_operand.hbm [shape: f32[32,128], index: 0, kind: input, shape index: {}]
  %s1 = inlined_call_operand.hbm [shape: bf16[128,128], index: 1, kind: input, shape index: {}]
  %s2 = inlined_call_operand.vmem [shape: f32[1,128], index: 2, kind: input, shape index: {}]
  %s3 = inlined_call_operand.hbm [shape: bf16[128,128], index: 3, kind: input, shape index: {}]
  %s4 = inlined_call_operand.vmem [shape: f32[1,128], index: 4, kind: input, shape index: {}]
  %s5 = inlined_call_operand.hbm [shape: bf16[32,128], index: 5, kind: output, shape index: {}]
  %s6 = sld [smem:[#allocation0]]
  $region42: #{tpu_custom_call.1} parent=0
    _
  %s8 = ssub.s32 1, %s6
  %s9 = scalar_select 0, %s8, %s6
  $region1: #{tpu_custom_call.1} parent=0
    #allocation2 [shape = 'u8[16384]{0}', space=vmem, size = 0x4000, scoped, tag = 'input window, operand 0, single buffered']
    #allocation3 [shape = 's32[1]{0}', space=sflag, size = 0x4, scoped, tag = 'scoped memory for tpu_custom_call.1']
    #allocation4 [shape = 's32[1]{0}', space=sflag, size = 0x4, scoped, tag = 'scoped memory for tpu_custom_call.1']
    #allocation5 [shape = 'u8[32768]{0}', space=vmem, size = 0x8000, scoped, tag = 'input window, operand 1, single buffered']
    #allocation6 [shape = 's32[1]{0}', space=sflag, size = 0x4, scoped, tag = 'scoped memory for tpu_custom_call.1']
    #allocation7 [shape = 'u8[32768]{0}', space=vmem, size = 0x8000, scoped, tag = 'input window, operand 3, single buffered']
    #allocation8 [shape = 'u8[8192]{0}', space=vmem, size = 0x2000, scoped, tag = 'output window, operand 0, single buffered']
    %10 = vsyncpa [#allocation3], 0
    %11 = vsyncpa [#allocation6], 0
    %12 = vsyncpa [#allocation4], 0
    // Predicated region
    $region2: #{tpu_custom_call.1} parent=1 // pred_check
      _
    $region3: #{tpu_custom_call.1} parent=1 // pred_check_branch
      %14 = sbr.rel (0) target = $region5
    $region4: #{tpu_custom_call.1} parent=1 // pred_region
      %s16 = ssub.s32 512, 512
      %17 = vsyncadd [#allocation3], %s16
      %s18 = sshll.u32 [#allocation2], 4
      %s19 = int_to_ptr.vmem [resolvable:$true] %s18
      %24 = dma.hbm_to_vmem [thread:$0]  %s0, 512, %s19, [#allocation3], 128, 128, 8
    $region5: #{tpu_custom_call.1} parent=1 // pred_fallthru
      _
    // Predicated region
    $region6: #{tpu_custom_call.1} parent=1 // pred_check
      _
    $region7: #{tpu_custom_call.1} parent=1 // pred_check_branch
      %26 = sbr.rel (0) target = $region9
    $region8: #{tpu_custom_call.1} parent=1 // pred_region
      %s28 = ssub.s32 1024, 1024
      %29 = vsyncadd [#allocation6], %s28
      %s30 = sshll.u32 [#allocation5], 4
      %s31 = int_to_ptr.vmem [resolvable:$true] %s30
      %36 = dma.hbm_to_vmem [thread:$0]  %s1, 1024, %s31, [#allocation6], 64, 64, 4
    $region9: #{tpu_custom_call.1} parent=1 // pred_fallthru
      _
    // Predicated region
    $region10: #{tpu_custom_call.1} parent=1 // pred_check
      _
    $region11: #{tpu_custom_call.1} parent=1 // pred_check_branch
      %38 = sbr.rel (0) target = $region13
    $region12: #{tpu_custom_call.1} parent=1 // pred_region
      _
    $region13: #{tpu_custom_call.1} parent=1 // pred_fallthru
      _
    // Predicated region
    $region14: #{tpu_custom_call.1} parent=1 // pred_check
      _
    $region15: #{tpu_custom_call.1} parent=1 // pred_check_branch
      %40 = sbr.rel (0) target = $region17
    $region16: #{tpu_custom_call.1} parent=1 // pred_region
      %s42 = ssub.s32 1024, 1024
      %43 = vsyncadd [#allocation6], %s42
      %s44 = sshll.u32 [#allocation7], 4
      %s45 = int_to_ptr.vmem [resolvable:$true] %s44
      %50 = dma.hbm_to_vmem [thread:$0]  %s3, 1024, %s45, [#allocation6], 64, 64, 4
    $region17: #{tpu_custom_call.1} parent=1 // pred_fallthru
      _
    // Predicated region
    $region18: #{tpu_custom_call.1} parent=1 // pred_check
      _
    $region19: #{tpu_custom_call.1} parent=1 // pred_check_branch
      %52 = sbr.rel (0) target = $region21
    $region20: #{tpu_custom_call.1} parent=1 // pred_region
      _
    $region21: #{tpu_custom_call.1} parent=1 // pred_fallthru
      _
    // Predicated region
    $region22: #{tpu_custom_call.1} parent=1 // pred_check
      _
    $region23: #{tpu_custom_call.1} parent=1 // pred_check_branch
      %54 = sbr.rel (0) target = $region25
    $region24: #{tpu_custom_call.1} parent=1 // pred_region
      %55 = dma.done [#allocation3], 512
    $region25: #{tpu_custom_call.1} parent=1 // pred_fallthru
      _
    // Predicated region
    $region26: #{tpu_custom_call.1} parent=1 // pred_check
      _
    $region27: #{tpu_custom_call.1} parent=1 // pred_check_branch
      %57 = sbr.rel (0) target = $region29
    $region28: #{tpu_custom_call.1} parent=1 // pred_region
      %58 = dma.done [#allocation6], 1024
    $region29: #{tpu_custom_call.1} parent=1 // pred_fallthru
      _
    // Predicated region
    $region30: #{tpu_custom_call.1} parent=1 // pred_check
      _
    $region31: #{tpu_custom_call.1} parent=1 // pred_check_branch
      %60 = sbr.rel (0) target = $region33
    $region32: #{tpu_custom_call.1} parent=1 // pred_region
      %61 = dma.done [#allocation6], 1024
    $region33: #{tpu_custom_call.1} parent=1 // pred_fallthru
      _
    %v63 = vld [vmem:[#allocation2] sm:$0xff]
    %v64 = vld [vmem:[#allocation2 + $0x8] sm:$0xff]
    %v65 = vld [vmem:[#allocation2 + $0x10] sm:$0xff]
    %v66 = vld [vmem:[#allocation2 + $0x18] sm:$0xff]
    %v67 = vpack.c.bf16 %v64, %v63
    %v68 = vpack.c.bf16 %v66, %v65
    %v69 = vld [vmem:[#allocation5] sm:$0xf]
    %v70 = vld [vmem:[#allocation5 + $0x4] sm:$0xf]
    %v71 = vld [vmem:[#allocation5 + $0x8] sm:$0xf]
    %v72 = vld [vmem:[#allocation5 + $0xc] sm:$0xf]
    %v73 = vld [vmem:[#allocation5 + $0x10] sm:$0xf]
    %v74 = vld [vmem:[#allocation5 + $0x14] sm:$0xf]
    %v75 = vld [vmem:[#allocation5 + $0x18] sm:$0xf]
    %v76 = vld [vmem:[#allocation5 + $0x1c] sm:$0xf]
    %v77 = vld [vmem:[#allocation5 + $0x20] sm:$0xf]
    %v78 = vld [vmem:[#allocation5 + $0x24] sm:$0xf]
    %v79 = vld [vmem:[#allocation5 + $0x28] sm:$0xf]
    %v80 = vld [vmem:[#allocation5 + $0x2c] sm:$0xf]
    %v81 = vld [vmem:[#allocation5 + $0x30] sm:$0xf]
    %v82 = vld [vmem:[#allocation5 + $0x34] sm:$0xf]
    %v83 = vld [vmem:[#allocation5 + $0x38] sm:$0xf]
    %v84 = vld [vmem:[#allocation5 + $0x3c] sm:$0xf]
    %v85 = vld [vmem:[%s2] sm:$0x1]
    %v87 = vlaneseq
    %v88 = vshrl.u32 %v87, 7
    %v89 = vsub.s32 0, %v88
    %v90 = vrot.slane %v85, %v89
    %v108 = vunpack.c.l.b16 %v69
    %v109 = vunpack.c.l.b16 %v70
    %v110 = vunpack.c.l.b16 %v71
    %v111 = vunpack.c.l.b16 %v72
    %v112 = vunpack.c.l.b16 %v73
    %v113 = vunpack.c.l.b16 %v74
    %v114 = vunpack.c.l.b16 %v75
    %v115 = vunpack.c.l.b16 %v76
    %v116 = vunpack.c.l.b16 %v77
    %v117 = vunpack.c.l.b16 %v78
    %v118 = vunpack.c.l.b16 %v79
    %v119 = vunpack.c.l.b16 %v80
    %v120 = vunpack.c.l.b16 %v81
    %v121 = vunpack.c.l.b16 %v82
    %v122 = vunpack.c.l.b16 %v83
    %v123 = vunpack.c.l.b16 %v84
    %v124 = vpack.c.b16 %v109, %v108
    %v125 = vpack.c.b16 %v111, %v110
    %v126 = vpack.c.b16 %v113, %v112
    %v127 = vpack.c.b16 %v115, %v114
    %v128 = vpack.c.b16 %v117, %v116
    %v129 = vpack.c.b16 %v119, %v118
    %v130 = vpack.c.b16 %v121, %v120
    %v131 = vpack.c.b16 %v123, %v122
    %140 = vmatprep.subr.bf16.mxu0 0
    %141 = vmatpush1.bf16.msra.mxu0 %v131
    %142 = vmatprep.subr.bf16.mxu0 0
    %143 = vmatpush1.bf16.msra.mxu0 %v130
    %144 = vmatprep.subr.bf16.mxu0 0
    %145 = vmatpush1.bf16.msra.mxu0 %v129
    %146 = vmatprep.subr.bf16.mxu0 0
    %147 = vmatpush1.bf16.msra.mxu0 %v128
    %148 = vmatprep.subr.bf16.mxu0 0
    %149 = vmatpush1.bf16.msra.mxu0 %v127
    %150 = vmatprep.subr.bf16.mxu0 0
    %151 = vmatpush1.bf16.msra.mxu0 %v126
    %152 = vmatprep.subr.bf16.mxu0 0
    %153 = vmatpush1.bf16.msra.mxu0 %v125
    %154 = vmatprep.subr.bf16.mxu0 0
    %155 = vmatpush1.bf16.msra.mxu0 %v124
    %156 = vmatprep.subr.bf16.mxu0 0
    %157 = vmatpush2.bf16.msra.mxu0 0
    %158 = vmatprep.subr.bf16.mxu0 0
    %159 = vmatpush2.bf16.msra.mxu0 0
    %160 = vmatprep.subr.bf16.mxu0 0
    %161 = vmatpush2.bf16.msra.mxu0 0
    %162 = vmatprep.subr.bf16.mxu0 0
    %163 = vmatpush2.bf16.msra.mxu0 0
    %164 = vmatprep.subr.bf16.mxu0 0
    %165 = vmatpush2.bf16.msra.mxu0 0
    %166 = vmatprep.subr.bf16.mxu0 0
    %167 = vmatpush2.bf16.msra.mxu0 0
    %168 = vmatprep.subr.bf16.mxu0 0
    %169 = vmatpush2.bf16.msra.mxu0 0
    %170 = vmatprep.subr.bf16.mxu0 0
    %171 = vmatpush2.bf16.msra.mxu0 0
    %172 = vmatprep.mubr.bf16.mxu0 0
    %173 = vmatmul.mubr.bf16.gmra.mxu0 %v67
    %v174 = vpop.f32.mrf.mxu0
    %v175 = vadd.f32 %v90, %v174
    %v176 = vpop.f32.mrf.mxu0
    %v177 = vpop.f32.mrf.mxu0
    %v178 = vadd.f32 %v90, %v177
    %v179 = vpop.f32.mrf.mxu0
    %180 = vmatprep.mubr.bf16.mxu0 0
    %181 = vmatmul.mubr.bf16.gmra.mxu0 %v68
    %v182 = vpop.f32.mrf.mxu0
    %v183 = vadd.f32 %v90, %v182
    %v184 = vpop.f32.mrf.mxu0
    %v185 = vpop.f32.mrf.mxu0
    %v186 = vadd.f32 %v90, %v185
    %v187 = vpop.f32.mrf.mxu0
    %188 = vdwg.mxu0
    %v189 = vmax.f32 %v175, 0.0
    %v190 = vmax.f32 %v178, 0.0
    %v191 = vmax.f32 %v183, 0.0
    %v192 = vmax.f32 %v186, 0.0
    %v193 = vpack.c.bf16 %v190, %v189
    %v194 = vpack.c.bf16 %v192, %v191
    %v195 = vld [vmem:[#allocation7] sm:$0xf]
    %v196 = vld [vmem:[#allocation7 + $0x4] sm:$0xf]
    %v197 = vld [vmem:[#allocation7 + $0x8] sm:$0xf]
    %v198 = vld [vmem:[#allocation7 + $0xc] sm:$0xf]
    %v199 = vld [vmem:[#allocation7 + $0x10] sm:$0xf]
    %v200 = vld [vmem:[#allocation7 + $0x14] sm:$0xf]
    %v201 = vld [vmem:[#allocation7 + $0x18] sm:$0xf]
    %v202 = vld [vmem:[#allocation7 + $0x1c] sm:$0xf]
    %v203 = vld [vmem:[#allocation7 + $0x20] sm:$0xf]
    %v204 = vld [vmem:[#allocation7 + $0x24] sm:$0xf]
    %v205 = vld [vmem:[#allocation7 + $0x28] sm:$0xf]
    %v206 = vld [vmem:[#allocation7 + $0x2c] sm:$0xf]
    %v207 = vld [vmem:[#allocation7 + $0x30] sm:$0xf]
    %v208 = vld [vmem:[#allocation7 + $0x34] sm:$0xf]
    %v209 = vld [vmem:[#allocation7 + $0x38] sm:$0xf]
    %v210 = vld [vmem:[#allocation7 + $0x3c] sm:$0xf]
    %v211 = vld [vmem:[%s4] sm:$0x1]
    %v213 = vlaneseq
    %v214 = vshrl.u32 %v213, 7
    %v215 = vsub.s32 0, %v214
    %v216 = vrot.slane %v211, %v215
    %v234 = vunpack.c.l.b16 %v195
    %v235 = vunpack.c.l.b16 %v196
    %v236 = vunpack.c.l.b16 %v197
    %v237 = vunpack.c.l.b16 %v198
    %v238 = vunpack.c.l.b16 %v199
    %v239 = vunpack.c.l.b16 %v200
    %v240 = vunpack.c.l.b16 %v201
    %v241 = vunpack.c.l.b16 %v202
    %v242 = vunpack.c.l.b16 %v203
    %v243 = vunpack.c.l.b16 %v204
    %v244 = vunpack.c.l.b16 %v205
    %v245 = vunpack.c.l.b16 %v206
    %v246 = vunpack.c.l.b16 %v207
    %v247 = vunpack.c.l.b16 %v208
    %v248 = vunpack.c.l.b16 %v209
    %v249 = vunpack.c.l.b16 %v210
    %v250 = vpack.c.b16 %v235, %v234
    %v251 = vpack.c.b16 %v237, %v236
    %v252 = vpack.c.b16 %v239, %v238
    %v253 = vpack.c.b16 %v241, %v240
    %v254 = vpack.c.b16 %v243, %v242
    %v255 = vpack.c.b16 %v245, %v244
    %v256 = vpack.c.b16 %v247, %v246
    %v257 = vpack.c.b16 %v249, %v248
    %266 = vmatprep.subr.bf16.mxu0 0
    %267 = vmatpush1.bf16.msra.mxu0 %v257
    %268 = vmatprep.subr.bf16.mxu0 0
    %269 = vmatpush1.bf16.msra.mxu0 %v256
    %270 = vmatprep.subr.bf16.mxu0 0
    %271 = vmatpush1.bf16.msra.mxu0 %v255
    %272 = vmatprep.subr.bf16.mxu0 0
    %273 = vmatpush1.bf16.msra.mxu0 %v254
    %274 = vmatprep.subr.bf16.mxu0 0
    %275 = vmatpush1.bf16.msra.mxu0 %v253
    %276 = vmatprep.subr.bf16.mxu0 0
    %277 = vmatpush1.bf16.msra.mxu0 %v252
    %278 = vmatprep.subr.bf16.mxu0 0
    %279 = vmatpush1.bf16.msra.mxu0 %v251
    %280 = vmatprep.subr.bf16.mxu0 0
    %281 = vmatpush1.bf16.msra.mxu0 %v250
    %282 = vmatprep.subr.bf16.mxu0 0
    %283 = vmatpush2.bf16.msra.mxu0 0
    %284 = vmatprep.subr.bf16.mxu0 0
    %285 = vmatpush2.bf16.msra.mxu0 0
    %286 = vmatprep.subr.bf16.mxu0 0
    %287 = vmatpush2.bf16.msra.mxu0 0
    %288 = vmatprep.subr.bf16.mxu0 0
    %289 = vmatpush2.bf16.msra.mxu0 0
    %290 = vmatprep.subr.bf16.mxu0 0
    %291 = vmatpush2.bf16.msra.mxu0 0
    %292 = vmatprep.subr.bf16.mxu0 0
    %293 = vmatpush2.bf16.msra.mxu0 0
    %294 = vmatprep.subr.bf16.mxu0 0
    %295 = vmatpush2.bf16.msra.mxu0 0
    %296 = vmatprep.subr.bf16.mxu0 0
    %297 = vmatpush2.bf16.msra.mxu0 0
    %298 = vmatprep.mubr.bf16.mxu0 0
    %299 = vmatmul.mubr.bf16.gmra.mxu0 %v193
    %v300 = vpop.f32.mrf.mxu0
    %v301 = vadd.f32 %v216, %v300
    %v302 = vpop.f32.mrf.mxu0
    %v303 = vpop.f32.mrf.mxu0
    %v304 = vadd.f32 %v216, %v303
    %v305 = vpop.f32.mrf.mxu0
    %306 = vmatprep.mubr.bf16.mxu0 0
    %307 = vmatmul.mubr.bf16.gmra.mxu0 %v194
    %v308 = vpop.f32.mrf.mxu0
    %v309 = vadd.f32 %v216, %v308
    %v310 = vpop.f32.mrf.mxu0
    %v311 = vpop.f32.mrf.mxu0
    %v312 = vadd.f32 %v216, %v311
    %v313 = vpop.f32.mrf.mxu0
    %314 = vdwg.mxu0
    %v315 = vpack.c.bf16 %v304, %v301
    %v316 = vpack.c.bf16 %v312, %v309
    %v319 = vunpack.c.l.b16 %v315
    %v320 = vunpack.c.h.b16 %v315
    %v321 = vunpack.c.l.b16 %v316
    %v322 = vunpack.c.h.b16 %v316
    %v323 = vpack.c.b16 %v319, %v319
    %v324 = vpack.c.b16 %v320, %v320
    %v325 = vpack.c.b16 %v321, %v321
    %v326 = vpack.c.b16 %v322, %v322
    %331 = vst [vmem:[#allocation8] sm:$0xf] %v323
    %332 = vst [vmem:[#allocation8 + $0x4] sm:$0xf] %v324
    %333 = vst [vmem:[#allocation8 + $0x8] sm:$0xf] %v325
    %334 = vst [vmem:[#allocation8 + $0xc] sm:$0xf] %v326
    // Predicated region
    $region34: #{tpu_custom_call.1} parent=1 // pred_check
      _
    $region35: #{tpu_custom_call.1} parent=1 // pred_check_branch
      %336 = sbr.rel (0) target = $region37
    $region36: #{tpu_custom_call.1} parent=1 // pred_region
      %s338 = ssub.s32 256, 256
      %339 = vsyncadd [#allocation4], %s338
      %s340 = sshll.u32 [#allocation8], 4
      %s341 = int_to_ptr.vmem [resolvable:$true] %s340
      %346 = dma.vmem_to_hbm [thread:$0]  %s341, 256, %s5, [#allocation4], 64, 64, 4
    $region37: #{tpu_custom_call.1} parent=1 // pred_fallthru
      _
    // Predicated region
    $region38: #{tpu_custom_call.1} parent=1 // pred_check
      _
    $region39: #{tpu_custom_call.1} parent=1 // pred_check_branch
      %348 = sbr.rel (0) target = $region41
    $region40: #{tpu_custom_call.1} parent=1 // pred_region
      %349 = dma.done [#allocation4], 256
    $region41: #{tpu_custom_call.1} parent=1 // pred_fallthru
      _
    %350 = vsyncpa [#allocation3], 1
    %351 = vsyncpa [#allocation6], 1
    %352 = vsyncpa [#allocation4], 1

</llo_original>
